<compile_context>
chip_gen: v7x
topology: tpu7x:2x2x1
jax: 0.10.0
libtpu: 0.0.40
codegen_flags: <defaults>
</compile_context>

<pallas_src>
import functools

import jax
import jax.numpy as jnp
from jax.experimental import pallas as pl
from jax.experimental.pallas import tpu as pltpu


def _col_minmax_kernel(w_ref, min_ref, max_ref, *, n_rows, tm):
    """Per-column min/max over row tiles.

    Grid axes: (j = column tile, parallel) x (i = row tile, reduction, last).
    min_ref / max_ref map to the same (1, tk) block for every row step, so
    they stay resident in VMEM and accumulate (P3 pattern).
    """
    i = pl.program_id(1)  # row-tile index (reduction axis, last in grid)

    tile = w_ref[...].astype(jnp.float32)  # (tm, tk)

    # Mask rows of the (possibly ragged) last row tile that fall past n_rows.
    row_ids = i * tm + jax.lax.broadcasted_iota(jnp.int32, tile.shape, 0)
    valid = row_ids < n_rows
    tile_for_min = jnp.where(valid, tile, jnp.inf)
    tile_for_max = jnp.where(valid, tile, -jnp.inf)

    tile_min = jnp.min(tile_for_min, axis=0, keepdims=True)  # (1, tk)
    tile_max = jnp.max(tile_for_max, axis=0, keepdims=True)  # (1, tk)

    @pl.when(i == 0)
    def _init():
        min_ref[...] = tile_min
        max_ref[...] = tile_max

    @pl.when(i > 0)
    def _accum():
        min_ref[...] = jnp.minimum(min_ref[...], tile_min)
        max_ref[...] = jnp.maximum(max_ref[...], tile_max)


@functools.partial(jax.jit, static_argnames=("tm", "tk"))
def _col_minmax_pallas(w, *, tm, tk):
    """Returns (per-column min [K], per-column max [K]) of a 2D weight."""
    N, K = w.shape
    grid = (pl.cdiv(K, tk), pl.cdiv(N, tm))  # reduction (rows) axis LAST

    kernel = functools.partial(_col_minmax_kernel, n_rows=N, tm=tm)

    mn, mx = pl.pallas_call(
        kernel,
        out_shape=(
            jax.ShapeDtypeStruct((1, K), jnp.float32),  # col mins
            jax.ShapeDtypeStruct((1, K), jnp.float32),  # col maxes
        ),
        grid_spec=pltpu.PrefetchScalarGridSpec(
            num_scalar_prefetch=0,
            grid=grid,
            in_specs=[
                pl.BlockSpec((tm, tk), lambda j, i: (i, j)),  # weight tile
            ],
            out_specs=[
                pl.BlockSpec((1, tk), lambda j, i: (0, j)),   # min accumulator
                pl.BlockSpec((1, tk), lambda j, i: (0, j)),   # max accumulator
            ],
        ),
        compiler_params=pltpu.CompilerParams(
            # column tiles are independent (megacore / v7x 2-TC sharding);
            # row axis is the reduction -> arbitrary.
            dimension_semantics=("parallel", "arbitrary"),
            vmem_limit_bytes=48 << 20,  # fits v7x's 64 MiB physical VMEM
        ),
    )(w)

    return mn.reshape(K), mx.reshape(K)


def _pick_tiles(N, K, tm_target=512, tk_target=2048):
    """Pick (tm, tk) respecting the (8, 128) block constraint and VMEM budget."""
    # Column (lane) tile: multiple of 128, or the full K dimension.
    if K % 128 == 0 and K > tk_target:
        tk = tk_target
    else:
        tk = K
    # Row (sublane) tile: multiple of 8, or the full N dimension.
    if N <= tm_target:
        tm = N
    else:
        tm = tm_target
        # Keep a double-buffered f32 input tile comfortably inside scoped VMEM.
        max_tile_bytes = 8 << 20
        while tm > 8 and tm * tk * 4 > max_tile_bytes:
            tm //= 2
    return tm, tk


class WeightEqualizationObserver:
    """JAX/Pallas analogue of _WeightEqualizationObserver.

    Tracks running per-column min/max of 2D Linear weights (column observer
    uses ch_axis=1, i.e. reduce over rows). forward() returns the input
    unchanged (observer pass-through — no data copy is made).
    """

    def __init__(self, tm_target=512, tk_target=2048):
        # Matches PyTorch: the top-level observer records ch_axis = 0, while
        # the internal column observer reduces with ch_axis = 1.
        self.ch_axis = 0
        self.min_vals = None   # [K] running per-column minima once observed
        self.max_vals = None   # [K] running per-column maxima once observed
        self.equalization_scale = jnp.empty((0,), dtype=jnp.float32)
        self._tm_target = tm_target
        self._tk_target = tk_target
        # TODO(synk): calculate_qparams / calculate_scaled_minmax live outside
        # the forward pass and are not implemented as kernels here.

    def __call__(self, w_orig):
        if w_orig.ndim != 2:
            raise ValueError("WeightEqualizationObserver only supports Linear layers")
        N, K = w_orig.shape
        tm, tk = _pick_tiles(N, K, self._tm_target, self._tk_target)

        mn, mx = _col_minmax_pallas(w_orig, tm=tm, tk=tk)

        if self.min_vals is None:
            self.min_vals, self.max_vals = mn, mx
        else:
            self.min_vals = jnp.minimum(self.min_vals, mn)
            self.max_vals = jnp.maximum(self.max_vals, mx)

        # Observer is a pass-through: return the original array (no copy).
        return w_orig

    def get_weight_col_minmax(self):
        return self.min_vals, self.max_vals

    def set_equalization_scale(self, equalization_scale):
        self.equalization_scale = equalization_scale


if __name__ == "__main__":
    key = jax.random.PRNGKey(0)
    k1, k2, k3 = jax.random.split(key, 3)

    # Linear weight: [out_features, in_features] = [16, 32]
    w1 = jax.random.normal(k1, (16, 32), dtype=jnp.float32)
    w2 = jax.random.normal(k2, (16, 32), dtype=jnp.float32) * 2.0

    obs = WeightEqualizationObserver()
    out1 = jax.block_until_ready(obs(w1))   # first observation
    out2 = jax.block_until_ready(obs(w2))   # running update
    mn = jax.block_until_ready(obs.min_vals)
    mx = jax.block_until_ready(obs.max_vals)

    ref_min = jnp.minimum(jnp.min(w1, axis=0), jnp.min(w2, axis=0))
    ref_max = jnp.maximum(jnp.max(w1, axis=0), jnp.max(w2, axis=0))
    assert out1 is w1 and out2 is w2, "forward must be a pass-through"
    assert jnp.allclose(mn, ref_min), "per-column running min mismatch"
    assert jnp.allclose(mx, ref_max), "per-column running max mismatch"

    # Ragged-row-tile path: N not covered by an integer number of row tiles.
    w3 = jax.random.normal(k3, (20, 32), dtype=jnp.float32)
    obs2 = WeightEqualizationObserver(tm_target=8)   # forces ragged last tile
    obs2._tm_target = 8
    tm3, tk3 = 8, 32
    mn3, mx3 = _col_minmax_pallas(w3, tm=tm3, tk=tk3)
    mn3 = jax.block_until_ready(mn3)
    mx3 = jax.block_until_ready(mx3)
    assert jnp.allclose(mn3, jnp.min(w3, axis=0)), "ragged-tile min mismatch"
    assert jnp.allclose(mx3, jnp.max(w3, axis=0)), "ragged-tile max mismatch"

    print("KERNEL_OK")
</pallas_src>

<mosaic_0001>
module attributes {stable_mosaic.version = 11 : i64} {
  func.func @_col_minmax_kernel(%arg0: i32, %arg1: i32, %arg2: memref<16x32xf32, #tpu.memory_space<vmem>>, %arg3: memref<1x32xf32, #tpu.memory_space<vmem>>, %arg4: memref<1x32xf32, #tpu.memory_space<vmem>>) attributes {dimension_semantics = [#tpu.dimension_semantics<parallel>, #tpu.dimension_semantics<arbitrary>], iteration_bounds = array<i64: 1, 1>, scalar_prefetch = 0 : i64, scratch_operands = 0 : i64, tpu.core_type = #tpu.core_type<tc>, window_params = [{transform_indices = @transform_0, window_bounds = array<i64: 16, 32>}, {transform_indices = @transform_1, window_bounds = array<i64: 1, 32>}, {transform_indices = @transform_2, window_bounds = array<i64: 1, 32>}]} {
    %c0 = arith.constant 0 : index
    %c0_0 = arith.constant 0 : index
    %0 = vector.load %arg2[%c0, %c0_0] : memref<16x32xf32, #tpu.memory_space<vmem>>, vector<16x32xf32>
    %c16_i32 = arith.constant 16 : i32
    %1 = arith.muli %arg1, %c16_i32 : i32
    %2 = tpu.iota {dimensions = array<i32: 0>} : vector<16x32xi32>
    %3 = vector.broadcast %1 : i32 to vector<16x32xi32>
    %4 = arith.addi %3, %2 : vector<16x32xi32>
    %c16_i32_1 = arith.constant 16 : i32
    %5 = vector.broadcast %c16_i32_1 : i32 to vector<16x32xi32>
    %6 = arith.cmpi slt, %4, %5 : vector<16x32xi32>
    %cst = arith.constant 0x7F800000 : f32
    %7 = vector.broadcast %cst : f32 to vector<16x32xf32>
    %8 = arith.select %6, %0, %7 : vector<16x32xi1>, vector<16x32xf32>
    %cst_2 = arith.constant 0xFF800000 : f32
    %9 = vector.broadcast %cst_2 : f32 to vector<16x32xf32>
    %10 = arith.select %6, %0, %9 : vector<16x32xi1>, vector<16x32xf32>
    %cst_3 = arith.constant dense<0x7F800000> : vector<32xf32>
    %11 = vector.multi_reduction <minimumf>, %8, %cst_3 [0] : vector<16x32xf32> to vector<32xf32>
    %12 = vector.shape_cast %11 : vector<32xf32> to vector<1x32xf32>
    %cst_4 = arith.constant dense<0xFF800000> : vector<32xf32>
    %13 = vector.multi_reduction <maximumf>, %10, %cst_4 [0] : vector<16x32xf32> to vector<32xf32>
    %14 = vector.shape_cast %13 : vector<32xf32> to vector<1x32xf32>
    %c0_i32 = arith.constant 0 : i32
    %15 = arith.cmpi eq, %arg1, %c0_i32 : i32
    %16 = arith.extui %15 : i1 to i32
    %c0_i32_5 = arith.constant 0 : i32
    %17 = arith.cmpi ne, %16, %c0_i32_5 : i32
    scf.if %17 {
      %c0_8 = arith.constant 0 : index
      %c0_9 = arith.constant 0 : index
      %21 = vector.load %arg3[%c0_8, %c0_9] : memref<1x32xf32, #tpu.memory_space<vmem>>, vector<1x32xf32>
      tpu.vector_store %arg3[%c0_8, %c0_9], %12 {strides = array<i32>} : memref<1x32xf32, #tpu.memory_space<vmem>>, vector<1x32xf32>,
      %c0_10 = arith.constant 0 : index
      %c0_11 = arith.constant 0 : index
      %22 = vector.load %arg4[%c0_10, %c0_11] : memref<1x32xf32, #tpu.memory_space<vmem>>, vector<1x32xf32>
      tpu.vector_store %arg4[%c0_10, %c0_11], %14 {strides = array<i32>} : memref<1x32xf32, #tpu.memory_space<vmem>>, vector<1x32xf32>,
    } else {
    }
    %c0_i32_6 = arith.constant 0 : i32
    %18 = arith.cmpi sgt, %arg1, %c0_i32_6 : i32
    %19 = arith.extui %18 : i1 to i32
    %c0_i32_7 = arith.constant 0 : i32
    %20 = arith.cmpi ne, %19, %c0_i32_7 : i32
    scf.if %20 {
      %c0_8 = arith.constant 0 : index
      %c0_9 = arith.constant 0 : index
      %21 = vector.load %arg3[%c0_8, %c0_9] : memref<1x32xf32, #tpu.memory_space<vmem>>, vector<1x32xf32>
      %22 = arith.minimumf %21, %12 : vector<1x32xf32>
      %c0_10 = arith.constant 0 : index
      %c0_11 = arith.constant 0 : index
      %23 = vector.load %arg3[%c0_10, %c0_11] : memref<1x32xf32, #tpu.memory_space<vmem>>, vector<1x32xf32>
      tpu.vector_store %arg3[%c0_10, %c0_11], %22 {strides = array<i32>} : memref<1x32xf32, #tpu.memory_space<vmem>>, vector<1x32xf32>,
      %c0_12 = arith.constant 0 : index
      %c0_13 = arith.constant 0 : index
      %24 = vector.load %arg4[%c0_12, %c0_13] : memref<1x32xf32, #tpu.memory_space<vmem>>, vector<1x32xf32>
      %25 = arith.maximumf %24, %14 : vector<1x32xf32>
      %c0_14 = arith.constant 0 : index
      %c0_15 = arith.constant 0 : index
      %26 = vector.load %arg4[%c0_14, %c0_15] : memref<1x32xf32, #tpu.memory_space<vmem>>, vector<1x32xf32>
      tpu.vector_store %arg4[%c0_14, %c0_15], %25 {strides = array<i32>} : memref<1x32xf32, #tpu.memory_space<vmem>>, vector<1x32xf32>,
    } else {
    }
    return
  }
  func.func @transform_0(%arg0: i32, %arg1: i32) -> (i32, i32) {
    %c0_i32 = arith.constant 0 : i32
    return %arg1, %arg0 : i32, i32
  }
  func.func @transform_1(%arg0: i32, %arg1: i32) -> (i32, i32) {
    %c0_i32 = arith.constant 0 : i32
    %c0_i32_0 = arith.constant 0 : i32
    return %c0_i32, %arg0 : i32, i32
  }
  func.func @transform_2(%arg0: i32, %arg1: i32) -> (i32, i32) {
    %c0_i32 = arith.constant 0 : i32
    %c0_i32_0 = arith.constant 0 : i32
    return %c0_i32, %arg0 : i32, i32
  }
}

</mosaic_0001>

<llo_original>
// kernel: _col_minmax_pallas.1
$region0: #{_col_minmax_pallas.1}
  #allocation0 [shape = 'u32[]', space=smem, size = 0x4, offset = 0x4, fixed_abs, tag = 'smem constant byte address 0x4 - core index']
  #allocation1 [shape = 'u32[144,128]{1,0:T(1,128)}', space=vmem, size = 0x12000, scoped, tag = 'internal scratch']
  %s0 = inlined_call_operand.hbm [shape: f32[16,32], index: 0, kind: input, shape index: {}]
  %s1 = inlined_call_operand.hbm [shape: f32[1,32], index: 1, kind: output, shape index: {0}]
  %s2 = inlined_call_operand.hbm [shape: f32[1,32], index: 2, kind: output, shape index: {1}]
  %3 = xla_tuple %s1, %s2
  %s4 = sld [smem:[#allocation0]]
  $region34: #{_col_minmax_pallas.1} parent=0
    _
  %s6 = ssub.s32 1, %s4
  %s7 = scalar_select 0, %s6, %s4
  $region1: #{_col_minmax_pallas.1} parent=0
    #allocation2 [shape = 'u8[8192]{0}', space=vmem, size = 0x2000, scoped, tag = 'input window, operand 0, single buffered']
    #allocation3 [shape = 's32[1]{0}', space=sflag, size = 0x4, scoped, tag = 'scoped memory for _col_minmax_pallas.1']
    #allocation4 [shape = 's32[1]{0}', space=sflag, size = 0x4, scoped, tag = 'scoped memory for _col_minmax_pallas.1']
    #allocation5 [shape = 'u8[512]{0}', space=vmem, size = 0x400, scoped, tag = 'output window, operand 0, single buffered']
    #allocation6 [shape = 'u8[512]{0}', space=vmem, size = 0x400, scoped, tag = 'output window, operand 1, single buffered']
    #allocation7 [shape = 's32[1]{0}', space=sflag, size = 0x4, scoped, tag = 'scoped memory for _col_minmax_pallas.1']
    %8 = vsyncpa [#allocation3], 0
    %9 = vsyncpa [#allocation4], 0
    %10 = vsyncpa [#allocation7], 0
    // Predicated region
    $region2: #{_col_minmax_pallas.1} parent=1 // pred_check
      _
    $region3: #{_col_minmax_pallas.1} parent=1 // pred_check_branch
      %12 = sbr.rel (0) target = $region5
    $region4: #{_col_minmax_pallas.1} parent=1 // pred_region
      %s14 = ssub.s32 256, 256
      %15 = vsyncadd [#allocation3], %s14
      %s16 = sshll.u32 [#allocation2], 4
      %s17 = int_to_ptr.vmem [resolvable:$true] %s16
      %22 = dma.hbm_to_vmem [thread:$0]  %s0, 256, %s17, [#allocation3], 128, 128, 8
    $region5: #{_col_minmax_pallas.1} parent=1 // pred_fallthru
      _
    // Predicated region
    $region6: #{_col_minmax_pallas.1} parent=1 // pred_check
      _
    $region7: #{_col_minmax_pallas.1} parent=1 // pred_check_branch
      %24 = sbr.rel (0) target = $region9
    $region8: #{_col_minmax_pallas.1} parent=1 // pred_region
      %25 = dma.done [#allocation3], 256
    $region9: #{_col_minmax_pallas.1} parent=1 // pred_fallthru
      _
    %v26 = vld [vmem:[#allocation2] sm:$0xff]
    %v27 = vld [vmem:[#allocation2 + $0x8] sm:$0xff]
    %s28 = smul.u32 0, 16
    %v29 = vlaneseq
    %v30 = vshrl.u32 %v29, 7
    %v31 = vadd.s32 %v30, 8
    %v32 = vstv %s28
    %v33 = vadd.s32 %v32, %v30
    %v34 = vadd.s32 %v32, %v31
    %vm35 = vcmp.lt.s32.totalorder %v33, 16
    %vm36 = vcmp.lt.s32.totalorder %v34, 16
    %v37 = vsel %vm35, %v26, inf
    %v38 = vsel %vm36, %v27, inf
    %v39 = vsel %vm35, %v26, -inf
    %v40 = vsel %vm36, %v27, -inf
    %vm41 = vcmask 261120
    %v42 = vsel %vm41, %v37, inf
    %v43 = vsel %vm41, %v38, inf
    %v44 = vmin.f32 %v42, %v43
    %v45 = vrot.slane %v44, 4
    %v46 = vmin.f32 %v44, %v45
    %v47 = vrot.slane %v46, 2
    %v48 = vmin.f32 %v46, %v47
    %v49 = vrot.slane %v48, 1
    %v50 = vmin.f32 %v48, %v49
    %v51 = vsel %vm41, %v39, -inf
    %v52 = vsel %vm41, %v40, -inf
    %v53 = vmax.f32 %v51, %v52
    %v54 = vrot.slane %v53, 4
    %v55 = vmax.f32 %v53, %v54
    %v56 = vrot.slane %v55, 2
    %v57 = vmax.f32 %v55, %v56
    %v58 = vrot.slane %v57, 1
    %v59 = vmax.f32 %v57, %v58
    %p60 = scmp.eq.s32.totalorder 0, 0
    // Predicated region
    $region10: #{_col_minmax_pallas.1} parent=1 // pred_check
      %p61 = pneg %p60
    $region11: #{_col_minmax_pallas.1} parent=1 // pred_check_branch
      %63 = sbr.rel (%p61) target = $region13
    $region12: #{_col_minmax_pallas.1} parent=1 // pred_region
      %vm64 = vcmask 253952
      %65 = vst.msk [vmem:[#allocation5] sm:$0x1] %vm64, %v50
      %66 = vst.msk [vmem:[#allocation6] sm:$0x1] %vm64, %v59
    $region13: #{_col_minmax_pallas.1} parent=1 // pred_fallthru
      _
    %p67 = scmp.gt.s32.totalorder 0, 0
    // Predicated region
    $region14: #{_col_minmax_pallas.1} parent=1 // pred_check
      %p68 = pneg %p67
    $region15: #{_col_minmax_pallas.1} parent=1 // pred_check_branch
      %70 = sbr.rel (%p68) target = $region17
    $region16: #{_col_minmax_pallas.1} parent=1 // pred_region
      %v71 = vld [vmem:[#allocation5] sm:$0x1]
      %v72 = vmin.f32 %v71, %v50
      %vm73 = vcmask 253952
      %74 = vst.msk [vmem:[#allocation5] sm:$0x1] %vm73, %v72
      %v75 = vld [vmem:[#allocation6] sm:$0x1]
      %v76 = vmax.f32 %v75, %v59
      %77 = vst.msk [vmem:[#allocation6] sm:$0x1] %vm73, %v76
    $region17: #{_col_minmax_pallas.1} parent=1 // pred_fallthru
      _
    // Predicated region
    $region18: #{_col_minmax_pallas.1} parent=1 // pred_check
      _
    $region19: #{_col_minmax_pallas.1} parent=1 // pred_check_branch
      %79 = sbr.rel (0) target = $region21
    $region20: #{_col_minmax_pallas.1} parent=1 // pred_region
      %s81 = ssub.s32 16, 16
      %82 = vsyncadd [#allocation4], %s81
      %s84 = sshll.u32 [#allocation5], 4
      %s85 = int_to_ptr.vmem [resolvable:$true] %s84
      %87 = dma.vmem_to_hbm [thread:$0]  %s85, 16, %s1, [#allocation4]
    $region21: #{_col_minmax_pallas.1} parent=1 // pred_fallthru
      _
    // Predicated region
    $region22: #{_col_minmax_pallas.1} parent=1 // pred_check
      _
    $region23: #{_col_minmax_pallas.1} parent=1 // pred_check_branch
      %89 = sbr.rel (0) target = $region25
    $region24: #{_col_minmax_pallas.1} parent=1 // pred_region
      %s91 = ssub.s32 16, 16
      %92 = vsyncadd [#allocation7], %s91
      %s94 = sshll.u32 [#allocation6], 4
      %s95 = int_to_ptr.vmem [resolvable:$true] %s94
      %97 = dma.vmem_to_hbm [thread:$0]  %s95, 16, %s2, [#allocation7]
    $region25: #{_col_minmax_pallas.1} parent=1 // pred_fallthru
      _
    // Predicated region
    $region26: #{_col_minmax_pallas.1} parent=1 // pred_check
      _
    $region27: #{_col_minmax_pallas.1} parent=1 // pred_check_branch
      %99 = sbr.rel (0) target = $region29
    $region28: #{_col_minmax_pallas.1} parent=1 // pred_region
      %100 = dma.done [#allocation4], 16
    $region29: #{_col_minmax_pallas.1} parent=1 // pred_fallthru
      _
    // Predicated region
    $region30: #{_col_minmax_pallas.1} parent=1 // pred_check
      _
    $region31: #{_col_minmax_pallas.1} parent=1 // pred_check_branch
      %102 = sbr.rel (0) target = $region33
    $region32: #{_col_minmax_pallas.1} parent=1 // pred_region
      %103 = dma.done [#allocation7], 16
    $region33: #{_col_minmax_pallas.1} parent=1 // pred_fallthru
      _
    %104 = vsyncpa [#allocation3], 1
    %105 = vsyncpa [#allocation4], 1
    %106 = vsyncpa [#allocation7], 1

</llo_original>
